<compile_context>
chip_gen: v7x
topology: tpu7x:2x2x1
jax: 0.10.0
libtpu: 0.0.40
codegen_flags: <defaults>
</compile_context>

<pallas_src>
import functools

import jax
import jax.numpy as jnp
from jax.experimental import pallas as pl
from jax.experimental.pallas import tpu as pltpu

SIGMA = 1e-2   # soft-rasterizer spatial bandwidth
EPS = 1e-8


def _round_up(x, m):
    return (x + m - 1) // m * m


def _vmem_capacity_bytes():
    try:
        return int(pltpu.get_tpu_info().vmem_capacity_bytes)
    except Exception:
        return 64 * 1024 * 1024  # conservative: v7x per-TensorCore physical VMEM


def _bf16_transcendentals_supported():
    # v6e / v7x VPU+EUP have a bf16 path; v5e and older do not (cast = pure overhead).
    try:
        kind = jax.devices()[0].device_kind.lower()
    except Exception:
        return False
    return any(tag in kind for tag in ("v6", "v7", "tpu7"))


def _render_kernel(pix_ref, fxy_ref, fattr_ref, out_ref, acc_ref, *, use_bf16_exp):
    # pix_ref   : (2, TP)     prescaled pixel coords, rows [x, y], pixels on lanes
    # fxy_ref   : (1, TF, 2)  prescaled face centroid xy (faces on sublanes)
    # fattr_ref : (1, 8, TF)  bf16 rows [z, r, g, b, 1, 0, 0, 0] (faces on lanes)
    # out_ref   : (1, 8, TP)  f32 rows [z, r, g, b, alpha, 0, 0, 0]
    # acc_ref   : (8, TP)     f32 accumulator, resident across the face-tile axis
    k = pl.program_id(2)

    @pl.when(k == 0)
    def _():
        acc_ref[...] = jnp.zeros_like(acc_ref)

    px = pix_ref[0:1, :]                                  # (1, TP)
    py = pix_ref[1:2, :]                                  # (1, TP)

    fxy = fxy_ref[0]                                      # (TF, 2)
    fx = fxy[:, 0:1]                                      # (TF, 1)
    fy = fxy[:, 1:2]                                      # (TF, 1)

    # Squared distance, pure VPU broadcasts; coords are prescaled by 1/sqrt(SIGMA)
    # so no per-element *(1/SIGMA) and no a^2+b^2-2ab cancellation.
    dx = fx - px                                          # (TF, TP)
    dy = fy - py                                          # (TF, TP)
    dist2 = dx * dx + dy * dy                             # (TF, TP) f32

    if use_bf16_exp:
        w = jnp.exp((-dist2).astype(jnp.bfloat16))        # bf16 EUP exp (v6e/v7x)
    else:
        w = jnp.exp(-dist2)                               # f32 EUP exp (v5e)
    w = w.astype(jnp.bfloat16)                            # single-pass bf16 MXU operand

    # One bf16 MXU matmul accumulates all five per-pixel reductions: z, r, g, b, wsum.
    fattr = fattr_ref[0]                                  # (8, TF) bf16
    acc_ref[...] += jnp.dot(fattr, w, preferred_element_type=jnp.float32)  # (8, TP)

    @pl.when(k == pl.num_programs(2) - 1)
    def _():
        attrs = acc_ref[...]                              # (8, TP) f32
        wsum = attrs[4:5, :]                              # (1, TP)
        inv_denom = pl.reciprocal(wsum + EPS, approx=True)  # EUP vrcp
        alpha = 1.0 - jnp.exp(-wsum)                      # (1, TP)
        out8 = attrs * inv_denom                          # rows 5..7 are exactly 0
        row = jax.lax.broadcasted_iota(jnp.int32, out8.shape, 0)
        out8 = jnp.where(row == 4, jnp.broadcast_to(alpha, out8.shape), out8)
        out_ref[0] = out8                                 # one unmasked lane-dense store


def render_pallas(pix_t, face_xy, face_attrs_t, *, tile_p=None, tile_f=None):
    """Fused soft rasterize + shade.

    pix_t        : (2, P)    f32 prescaled pixel coords (pixels on lanes).
    face_xy      : (N, F, 2) f32 prescaled face centroid xy.
    face_attrs_t : (N, 8, F) bf16 rows [z, r, g, b, 1, 0, 0, 0].

    Returns (N, 8, P) f32 with rows [z, r, g, b, alpha, 0, 0, 0].
    """
    P = pix_t.shape[1]
    N, F, _ = face_xy.shape

    capacity = _vmem_capacity_bytes()
    budget = capacity // 6                      # budget for the (TF, TP) f32 intermediates

    # ---- face tiling (bounds VMEM regardless of F) ----
    if tile_f is None:
        tile_f = min(_round_up(F, 128), 512)
    F_pad = _round_up(F, tile_f)

    # ---- pixel tiling: biggest lane-dense tile that fits the budget; fallback 128 ----
    if tile_p is None:
        if P % 128 != 0:
            tile_p = P                          # small / odd P: single full-extent block
        else:
            tile_p = 128                        # safe fallback (never P for big F)
            for cand in (8192, 4096, 2048, 1024, 512, 256, 128):
                if P % cand == 0 and 4 * tile_f * cand * 4 <= budget:
                    tile_p = cand
                    break
    assert P % tile_p == 0

    # v7x has 2 TensorCores: make sure the parallel grid axes have >=2 steps.
    if N * (P // tile_p) < 2 and tile_p % 256 == 0:
        tile_p //= 2

    # ---- pad faces: zero attr columns (incl. the ones row) contribute nothing ----
    if F_pad != F:
        face_xy = jnp.pad(face_xy, ((0, 0), (0, F_pad - F), (0, 0)))
        face_attrs_t = jnp.pad(face_attrs_t, ((0, 0), (0, 0), (0, F_pad - F)))

    grid = (N, P // tile_p, F_pad // tile_f)

    # ---- VMEM sizing: intermediates + double-buffered blocks (incl. lane-padded
    #      face_xy block at ~512 B/face) + accumulator, with margin ----
    needed = (
        4 * tile_f * tile_p * 4                       # dx/dy/dist2/w working set
        + 2 * (8 * tile_p * 4)                        # pix blocks (sublane-padded), dbl-buf
        + 2 * (tile_f * 128 * 4)                      # face_xy blocks (lane-padded), dbl-buf
        + 2 * (8 * tile_f * 2)                        # face_attrs blocks (bf16), dbl-buf
        + 2 * (8 * tile_p * 4)                        # output blocks, dbl-buf
        + 8 * tile_p * 4                              # accumulator scratch
        + (1 << 20)                                   # slack
    )
    vmem_limit = int(min(max(2 * needed, 32 * 1024 * 1024), capacity * 3 // 4))

    use_bf16_exp = _bf16_transcendentals_supported()

    cost = pl.CostEstimate(
        flops=int((2 * 8 + 7) * F_pad * P * N),
        transcendentals=int(F_pad * P * N + 2 * P * N),
        bytes_accessed=int(
            pix_t.size * 4 + face_xy.size * 4
            + face_attrs_t.size * face_attrs_t.dtype.itemsize
            + N * 8 * P * 4
        ),
    )

    kernel = functools.partial(_render_kernel, use_bf16_exp=use_bf16_exp)

    return pl.pallas_call(
        kernel,
        out_shape=jax.ShapeDtypeStruct((N, 8, P), jnp.float32),
        grid_spec=pltpu.PrefetchScalarGridSpec(
            num_scalar_prefetch=0,
            grid=grid,
            in_specs=[
                pl.BlockSpec((2, tile_p), lambda n, p, k: (0, p)),
                pl.BlockSpec((1, tile_f, 2), lambda n, p, k: (n, k, 0)),
                pl.BlockSpec((1, 8, tile_f), lambda n, p, k: (n, 0, k)),
            ],
            out_specs=pl.BlockSpec((1, 8, tile_p), lambda n, p, k: (n, 0, p)),
            scratch_shapes=[pltpu.VMEM((8, tile_p), jnp.float32)],
        ),
        compiler_params=pltpu.CompilerParams(
            dimension_semantics=("parallel", "parallel", "arbitrary"),
            vmem_limit_bytes=vmem_limit,
        ),
        cost_estimate=cost,
    )(pix_t, face_xy, face_attrs_t)


class MeshRendererWithDepthV2:
    """JAX equivalent of MeshRendererWithDepth_v2: returns (images, zbuf)."""

    # TODO(synk): the true PyTorch3D hard rasterizer (per-pixel K-face z-buffer with
    # barycentric interpolation) has no clean Pallas equivalent; a differentiable
    # soft-rasterizer / flat-shader surrogate with K=1 is implemented instead.

    def __init__(self, image_size=16):
        self.image_size = image_size
        # pixel grid in NDC, transposed to (2, P): rows [x, y], pixels on lanes
        lin = jnp.linspace(-1.0, 1.0, image_size, dtype=jnp.float32)
        yy, xx = jnp.meshgrid(lin, lin, indexing="ij")
        self.pix_t = jnp.stack([xx.ravel(), yy.ravel()], axis=0)      # (2, P) unscaled (ref)
        self.pix_t_scaled = self.pix_t * (1.0 / (SIGMA ** 0.5))       # prescaled for kernel

    def __call__(self, verts, faces):
        # verts: (N, V, 3) f32 world-space vertices; faces: (F, 3) int32 indices.
        # ---- rasterizer/shader setup (glue, plain JAX) ----
        face_verts = verts[:, faces, :]                       # (N, F, 3, 3)
        centroid = jnp.mean(face_verts, axis=2)               # (N, F, 3)
        face_xy = centroid[..., :2]                           # (N, F, 2)
        face_z = centroid[..., 2] + 3.0                       # (N, F) camera offset
        face_col = jax.nn.sigmoid(centroid)                   # (N, F, 3) flat colors

        N, F = face_z.shape
        # (N, 8, F) rows: [z, r, g, b, 1, 0, 0, 0] -- ones row makes wsum fall out of
        # the same MXU matmul; zero rows pad to 8 sublanes.  bf16 = single-pass MXU operand.
        face_attrs_t = jnp.concatenate(
            [
                face_z[:, None, :],                            # (N, 1, F) z
                jnp.transpose(face_col, (0, 2, 1)),            # (N, 3, F) r,g,b
                jnp.ones((N, 1, F), jnp.float32),              # (N, 1, F) ones -> wsum
                jnp.zeros((N, 3, F), jnp.float32),             # (N, 3, F) pad
            ],
            axis=1,
        ).astype(jnp.bfloat16)

        # ---- fused rasterize + shade hot path (Pallas) ----
        inv_sqrt_sigma = 1.0 / (SIGMA ** 0.5)
        out = render_pallas(
            self.pix_t_scaled, face_xy * inv_sqrt_sigma, face_attrs_t)   # (N, 8, P)

        H = W = self.image_size
        zbuf = out[:, 0, :].reshape(N, H, W, 1)                          # fragments.zbuf, K=1
        images = jnp.transpose(out[:, 1:5, :], (0, 2, 1)).reshape(N, H, W, 4)  # RGBA
        return images, zbuf


def _reference(verts, faces, pix_t):
    """Pure-JAX f32 reference of the soft rasterizer / flat shader."""
    face_verts = verts[:, faces, :]
    centroid = jnp.mean(face_verts, axis=2)                   # (N, F, 3)
    fxy = centroid[..., :2]                                   # (N, F, 2)
    fz = centroid[..., 2] + 3.0                               # (N, F)
    fcol = jax.nn.sigmoid(centroid)                           # (N, F, 3)
    pix = pix_t.T                                             # (P, 2)
    d2 = jnp.sum((pix[None, :, None, :] - fxy[:, None, :, :]) ** 2, axis=-1)  # (N, P, F)
    w = jnp.exp(-d2 / SIGMA)
    wsum = jnp.sum(w, axis=-1)                                # (N, P)
    z = jnp.sum(w * fz[:, None, :], axis=-1) / (wsum + EPS)
    rgb = jnp.einsum("npf,nfc->npc", w, fcol) / (wsum + EPS)[..., None]
    alpha = 1.0 - jnp.exp(-wsum)
    return rgb, alpha, z, wsum


if __name__ == "__main__":
    key = jax.random.PRNGKey(0)
    k_v, k_f = jax.random.split(key)

    N, V, F = 2, 24, 64
    H = W = 16

    verts = jax.random.normal(k_v, (N, V, 3), dtype=jnp.float32) * 0.5
    faces = jax.random.randint(k_f, (F, 3), 0, V, dtype=jnp.int32)

    renderer = MeshRendererWithDepthV2(image_size=H)
    images, zbuf = renderer(verts, faces)
    jax.block_until_ready((images, zbuf))

    assert images.shape == (N, H, W, 4) and images.dtype == jnp.float32
    assert zbuf.shape == (N, H, W, 1) and zbuf.dtype == jnp.float32
    assert bool(jnp.all(jnp.isfinite(images))) and bool(jnp.all(jnp.isfinite(zbuf)))

    # correctness check vs. pure-JAX f32 reference
    # (loose tolerance: approx vrcp + bf16 exp/MXU operands)
    ref_rgb, ref_alpha, ref_z, _ = _reference(verts, faces, renderer.pix_t)
    ref_images = jnp.concatenate(
        [ref_rgb, ref_alpha[..., None]], axis=-1).reshape(N, H, W, 4)
    ref_zbuf = ref_z.reshape(N, H, W, 1)
    assert bool(jnp.allclose(images, ref_images, atol=2e-2, rtol=2e-2))
    assert bool(jnp.allclose(zbuf, ref_zbuf, atol=2e-2, rtol=2e-2))

    print("KERNEL_OK")
</pallas_src>

<mosaic_0001>
module attributes {stable_mosaic.version = 11 : i64} {
  func.func @_render_kernel(%arg0: i32, %arg1: i32, %arg2: i32, %arg3: memref<2x256xf32, #tpu.memory_space<vmem>>, %arg4: memref<1x128x2xf32, #tpu.memory_space<vmem>>, %arg5: memref<1x8x128xbf16, #tpu.memory_space<vmem>>, %arg6: memref<1x8x256xf32, #tpu.memory_space<vmem>>, %arg7: memref<8x256xf32, #tpu.memory_space<vmem>>) attributes {dimension_semantics = [#tpu.dimension_semantics<parallel>, #tpu.dimension_semantics<parallel>, #tpu.dimension_semantics<arbitrary>], iteration_bounds = array<i64: 2, 1, 1>, scalar_prefetch = 0 : i64, scratch_operands = 1 : i64, tpu.core_type = #tpu.core_type<tc>, window_params = [{transform_indices = @transform_0, window_bounds = array<i64: 2, 256>}, {transform_indices = @transform_1, window_bounds = array<i64: 1, 128, 2>}, {transform_indices = @transform_2, window_bounds = array<i64: 1, 8, 128>}, {transform_indices = @transform_3, window_bounds = array<i64: 1, 8, 256>}]} {
    %c0_i32 = arith.constant 0 : i32
    %0 = arith.cmpi eq, %arg2, %c0_i32 : i32
    %1 = arith.extui %0 : i1 to i32
    %c0_i32_0 = arith.constant 0 : i32
    %2 = arith.cmpi ne, %1, %c0_i32_0 : i32
    scf.if %2 {
      %cst_16 = arith.constant 0.000000e+00 : f32
      %31 = vector.broadcast %cst_16 : f32 to vector<8x256xf32>
      %c0_17 = arith.constant 0 : index
      %c0_18 = arith.constant 0 : index
      %32 = vector.load %arg7[%c0_17, %c0_18] : memref<8x256xf32, #tpu.memory_space<vmem>>, vector<8x256xf32>
      tpu.vector_store %arg7[%c0_17, %c0_18], %31 {strides = array<i32>} : memref<8x256xf32, #tpu.memory_space<vmem>>, vector<8x256xf32>,
    } else {
    }
    %c0 = arith.constant 0 : index
    %c0_1 = arith.constant 0 : index
    %3 = vector.load %arg3[%c0, %c0_1] : memref<2x256xf32, #tpu.memory_space<vmem>>, vector<1x256xf32>
    %c1 = arith.constant 1 : index
    %c0_2 = arith.constant 0 : index
    %4 = vector.load %arg3[%c1, %c0_2] : memref<2x256xf32, #tpu.memory_space<vmem>>, vector<1x256xf32>
    %c0_3 = arith.constant 0 : index
    %c0_4 = arith.constant 0 : index
    %c0_5 = arith.constant 0 : index
    %5 = vector.load %arg4[%c0_3, %c0_4, %c0_5] : memref<1x128x2xf32, #tpu.memory_space<vmem>>, vector<1x128x2xf32>
    %6 = vector.shape_cast %5 : vector<1x128x2xf32> to vector<128x2xf32>
    %7 = vector.extract_strided_slice %6 {offsets = [0, 0], sizes = [128, 1], strides = [1, 1]} : vector<128x2xf32> to vector<128x1xf32>
    %8 = vector.extract_strided_slice %6 {offsets = [0, 1], sizes = [128, 1], strides = [1, 1]} : vector<128x2xf32> to vector<128x1xf32>
    %9 = vector.broadcast %7 : vector<128x1xf32> to vector<128x256xf32>
    %10 = vector.broadcast %3 : vector<1x256xf32> to vector<128x256xf32>
    %11 = arith.subf %9, %10 : vector<128x256xf32>
    %12 = vector.broadcast %8 : vector<128x1xf32> to vector<128x256xf32>
    %13 = vector.broadcast %4 : vector<1x256xf32> to vector<128x256xf32>
    %14 = arith.subf %12, %13 : vector<128x256xf32>
    %15 = arith.mulf %11, %11 : vector<128x256xf32>
    %16 = arith.mulf %14, %14 : vector<128x256xf32>
    %17 = arith.addf %15, %16 : vector<128x256xf32>
    %cst = arith.constant 0.000000e+00 : f32
    %18 = vector.broadcast %cst : f32 to vector<128x256xf32>
    %19 = arith.subf %18, %17 : vector<128x256xf32>
    %20 = math.exp %19 : vector<128x256xf32>
    %21 = arith.truncf %20 : vector<128x256xf32> to vector<128x256xbf16>
    %c0_6 = arith.constant 0 : index
    %c0_7 = arith.constant 0 : index
    %c0_8 = arith.constant 0 : index
    %22 = vector.load %arg5[%c0_6, %c0_7, %c0_8] : memref<1x8x128xbf16, #tpu.memory_space<vmem>>, vector<1x8x128xbf16>
    %23 = vector.shape_cast %22 : vector<1x8x128xbf16> to vector<8x128xbf16>
    %c0_9 = arith.constant 0 : index
    %c0_10 = arith.constant 0 : index
    %24 = vector.load %arg7[%c0_9, %c0_10] : memref<8x256xf32, #tpu.memory_space<vmem>>, vector<8x256xf32>
    %cst_11 = arith.constant dense<0.000000e+00> : vector<8x256xf32>
    %25 = tpu.matmul %23, %21, %cst_11 {dimension_numbers = #tpu.dot_dimension_numbers<[1], [0], [0], [1], [0, 0, 1, 1], [], []>} : vector<8x128xbf16>, vector<128x256xbf16>, vector<8x256xf32> -> vector<8x256xf32>
    %26 = arith.addf %24, %25 : vector<8x256xf32>
    %c0_12 = arith.constant 0 : index
    %c0_13 = arith.constant 0 : index
    %27 = vector.load %arg7[%c0_12, %c0_13] : memref<8x256xf32, #tpu.memory_space<vmem>>, vector<8x256xf32>
    tpu.vector_store %arg7[%c0_12, %c0_13], %26 {strides = array<i32>} : memref<8x256xf32, #tpu.memory_space<vmem>>, vector<8x256xf32>,
    %c0_i32_14 = arith.constant 0 : i32
    %28 = arith.cmpi eq, %arg2, %c0_i32_14 : i32
    %29 = arith.extui %28 : i1 to i32
    %c0_i32_15 = arith.constant 0 : i32
    %30 = arith.cmpi ne, %29, %c0_i32_15 : i32
    scf.if %30 {
      %c0_16 = arith.constant 0 : index
      %c0_17 = arith.constant 0 : index
      %31 = vector.load %arg7[%c0_16, %c0_17] : memref<8x256xf32, #tpu.memory_space<vmem>>, vector<8x256xf32>
      %32 = vector.extract_strided_slice %31 {offsets = [4, 0], sizes = [1, 256], strides = [1, 1]} : vector<8x256xf32> to vector<1x256xf32>
      %cst_18 = arith.constant 9.99999993E-9 : f32
      %33 = vector.broadcast %cst_18 : f32 to vector<1x256xf32>
      %34 = arith.addf %32, %33 : vector<1x256xf32>
      %35 = tpu.reciprocal %34 {approx = true} : vector<1x256xf32> -> vector<1x256xf32>
      %cst_19 = arith.constant 0.000000e+00 : f32
      %36 = vector.broadcast %cst_19 : f32 to vector<1x256xf32>
      %37 = arith.subf %36, %32 : vector<1x256xf32>
      %38 = math.exp %37 : vector<1x256xf32>
      %cst_20 = arith.constant 1.000000e+00 : f32
      %39 = vector.broadcast %cst_20 : f32 to vector<1x256xf32>
      %40 = arith.subf %39, %38 : vector<1x256xf32>
      %41 = vector.broadcast %35 : vector<1x256xf32> to vector<8x256xf32>
      %42 = arith.mulf %31, %41 : vector<8x256xf32>
      %43 = tpu.iota {dimensions = array<i32: 0>} : vector<8x256xi32>
      %c4_i32 = arith.constant 4 : i32
      %44 = vector.broadcast %c4_i32 : i32 to vector<8x256xi32>
      %45 = arith.cmpi eq, %43, %44 : vector<8x256xi32>
      %46 = vector.shape_cast %40 : vector<1x256xf32> to vector<1x256xf32>
      %47 = vector.broadcast %46 : vector<1x256xf32> to vector<8x256xf32>
      %48 = arith.select %45, %47, %42 : vector<8x256xi1>, vector<8x256xf32>
      %c0_21 = arith.constant 0 : index
      %c0_22 = arith.constant 0 : index
      %c0_23 = arith.constant 0 : index
      %49 = vector.load %arg6[%c0_21, %c0_22, %c0_23] : memref<1x8x256xf32, #tpu.memory_space<vmem>>, vector<1x8x256xf32>
      %50 = vector.shape_cast %49 : vector<1x8x256xf32> to vector<8x256xf32>
      %51 = vector.shape_cast %48 : vector<8x256xf32> to vector<1x8x256xf32>
      tpu.vector_store %arg6[%c0_21, %c0_22, %c0_23], %51 {strides = array<i32>} : memref<1x8x256xf32, #tpu.memory_space<vmem>>, vector<1x8x256xf32>,
    } else {
    }
    return
  }
  func.func @transform_0(%arg0: i32, %arg1: i32, %arg2: i32) -> (i32, i32) {
    %c0_i32 = arith.constant 0 : i32
    %c0_i32_0 = arith.constant 0 : i32
    return %c0_i32, %arg1 : i32, i32
  }
  func.func @transform_1(%arg0: i32, %arg1: i32, %arg2: i32) -> (i32, i32, i32) {
    %c0_i32 = arith.constant 0 : i32
    %c0_i32_0 = arith.constant 0 : i32
    return %arg0, %arg2, %c0_i32 : i32, i32, i32
  }
  func.func @transform_2(%arg0: i32, %arg1: i32, %arg2: i32) -> (i32, i32, i32) {
    %c0_i32 = arith.constant 0 : i32
    %c0_i32_0 = arith.constant 0 : i32
    return %arg0, %c0_i32, %arg2 : i32, i32, i32
  }
  func.func @transform_3(%arg0: i32, %arg1: i32, %arg2: i32) -> (i32, i32, i32) {
    %c0_i32 = arith.constant 0 : i32
    %c0_i32_0 = arith.constant 0 : i32
    return %arg0, %c0_i32, %arg1 : i32, i32, i32
  }
}

</mosaic_0001>

<llo_original>
// kernel: tpu_custom_call.1
$region0: #{tpu_custom_call.1}
  #allocation0 [shape = 'u32[]', space=smem, size = 0x4, offset = 0x4, fixed_abs, tag = 'smem constant byte address 0x4 - core index']
  #allocation1 [shape = 'u32[144,128]{1,0:T(1,128)}', space=vmem, size = 0x12000, scoped, tag = 'internal scratch']
  #allocation2 [shape = 'f32[8,256]{1,0:T(8,128)}', space=vmem, size = 0x2000, scoped, tag = 'scratch operand']
  %s0 = inlined_call_operand.vmem [shape: f32[2,256], index: 0, kind: input, shape index: {}]
  %s1 = inlined_call_operand.vmem [shape: f32[2,128,2], index: 1, kind: input, shape index: {}]
  %s2 = inlined_call_operand.vmem [shape: bf16[2,8,128], index: 2, kind: input, shape index: {}]
  %s3 = inlined_call_operand.hbm [shape: f32[2,8,256], index: 3, kind: output, shape index: {}]
  %s4 = sld [smem:[#allocation0]]
  $region53: #{tpu_custom_call.1} parent=0
    _
  %s6 = ssub.s32 1, %s4
  %s7 = scalar_select 0, %s6, %s4
  $region1: #{tpu_custom_call.1} parent=0
    #allocation3 [shape = 'u8[16384]{0}', space=vmem, size = 0x4000, scoped, tag = 'output window, operand 0']
    #allocation4 [shape = 's32[2]{0}', space=sflag, size = 0x8, scoped, tag = 'scoped memory for tpu_custom_call.1']
    %8 = vsyncpa [#allocation4], 0
    %s9 = scalar_lea.sflag [#allocation4], 1
    %10 = vsyncpa %s9, 0
    loop: start=0, step=1, limit=4
    $region2: #{tpu_custom_call.1} parent=1 // loop_pre_header
      _
    $region3: #{tpu_custom_call.1} parent=1 // loop_header
      %s12 = sphi 0, %s16
      %p13 = scmp.ge.s32.totalorder %s12, 4
      %s19 = sphi 0, %s38
      %s20 = sphi 0, %s34
      %s21 = sphi 0, %s30
      %s22 = sphi 0, %s19
      %s23 = sphi 0, %s20
      %s24 = sphi 0, %s21
      %s25 = sphi 0, %s22
      %s26 = sphi 0, %s23
      %s27 = sphi 0, %s24
      %s41 = sphi 0, %s43
      %s44 = sphi 0, %s41
      %s45 = sphi 0, %s44
      %s61 = sphi 0, %s45
      %s69 = sphi 0, %s71
      %s72 = sphi 0, %s69
      %s73 = sphi 0, %s72
      %s89 = sphi 0, %s73
      %s97 = sphi 0, %s99
      %s100 = sphi 0, %s97
      %s101 = sphi 0, %s100
      %s117 = sphi 0, %s101
      %s125 = sphi 0, %s127
      %s128 = sphi 0, %s125
      %s129 = sphi 0, %s128
      %s145 = sphi 0, %s129
    $region4: #{tpu_custom_call.1} parent=1 // loop_header_branch
      %15 = sbr.rel (%p13) target = $region8
    $region5: #{tpu_custom_call.1} parent=1 // loop_body
      %s17 = ssub.s32 %s12, 1
      %s18 = ssub.s32 %s12, 2
      %s28 = sadd.s32 1, %s21
      %p29 = scmp.ge.s32.totalorder %s28, 1
      %s30 = scalar_select %p29, 0, %s28
      %s31 = sadd.s32 1, %s20
      %s32 = scalar_select %p29, %s31, %s20
      %p33 = scmp.ge.s32.totalorder %s32, 1
      %s34 = scalar_select %p33, 0, %s32
      %s35 = sadd.s32 1, %s19
      %s36 = scalar_select %p33, %s35, %s19
      %p37 = scmp.ge.s32.totalorder %s36, 2
      %s38 = scalar_select %p37, 0, %s36
      %s39 = ssub.s32 %s20, %s34
      %p40 = scmp.eq.s32.totalorder %s39, 0
      %s42 = sadd.s32 %s41, 1
      %s43 = scalar_select %p40, %s41, %s42
      %p46 = pneg %p40
      %p47 = scmp.eq.s32.totalorder %s12, 1
      %p48 = por %p46, %p47
      %p49 = scmp.ne.s32.totalorder %s41, %s44
      %p50 = scmp.eq.s32.totalorder %s12, 0
      %p51 = por %p49, %p50
      %p52 = scmp.ne.s32.totalorder %s41, %s44
      %p53 = scmp.eq.s32.totalorder %s17, 1
      %p54 = por %p52, %p53
      %p55 = scmp.ne.s32.totalorder %s44, %s45
      %p56 = scmp.eq.s32.totalorder %s17, 0
      %p57 = por %p55, %p56
      %p58 = scmp.ne.s32.totalorder %s44, %s45
      %p59 = scmp.eq.s32.totalorder %s18, 1
      %p60 = por %p58, %p59
      %p62 = scmp.ne.s32.totalorder %s45, %s61
      %p63 = scmp.eq.s32.totalorder %s18, 0
      %p64 = por %p62, %p63
      %s65 = ssub.s32 %s19, %s38
      %s66 = ssub.s32 %s21, %s30
      %s67 = sor.u32 %s65, %s66
      %p68 = scmp.eq.s32.totalorder %s67, 0
      %s70 = sadd.s32 %s69, 1
      %s71 = scalar_select %p68, %s69, %s70
      %p74 = pneg %p68
      %p75 = scmp.eq.s32.totalorder %s12, 1
      %p76 = por %p74, %p75
      %p77 = scmp.ne.s32.totalorder %s69, %s72
      %p78 = scmp.eq.s32.totalorder %s12, 0
      %p79 = por %p77, %p78
      %p80 = scmp.ne.s32.totalorder %s69, %s72
      %p81 = scmp.eq.s32.totalorder %s17, 1
      %p82 = por %p80, %p81
      %p83 = scmp.ne.s32.totalorder %s72, %s73
      %p84 = scmp.eq.s32.totalorder %s17, 0
      %p85 = por %p83, %p84
      %p86 = scmp.ne.s32.totalorder %s72, %s73
      %p87 = scmp.eq.s32.totalorder %s18, 1
      %p88 = por %p86, %p87
      %p90 = scmp.ne.s32.totalorder %s73, %s89
      %p91 = scmp.eq.s32.totalorder %s18, 0
      %p92 = por %p90, %p91
      %s93 = ssub.s32 %s19, %s38
      %s94 = ssub.s32 %s21, %s30
      %s95 = sor.u32 %s93, %s94
      %p96 = scmp.eq.s32.totalorder %s95, 0
      %s98 = sadd.s32 %s97, 1
      %s99 = scalar_select %p96, %s97, %s98
      %p102 = pneg %p96
      %p103 = scmp.eq.s32.totalorder %s12, 1
      %p104 = por %p102, %p103
      %p105 = scmp.ne.s32.totalorder %s97, %s100
      %p106 = scmp.eq.s32.totalorder %s12, 0
      %p107 = por %p105, %p106
      %p108 = scmp.ne.s32.totalorder %s97, %s100
      %p109 = scmp.eq.s32.totalorder %s17, 1
      %p110 = por %p108, %p109
      %p111 = scmp.ne.s32.totalorder %s100, %s101
      %p112 = scmp.eq.s32.totalorder %s17, 0
      %p113 = por %p111, %p112
      %p114 = scmp.ne.s32.totalorder %s100, %s101
      %p115 = scmp.eq.s32.totalorder %s18, 1
      %p116 = por %p114, %p115
      %p118 = scmp.ne.s32.totalorder %s101, %s117
      %p119 = scmp.eq.s32.totalorder %s18, 0
      %p120 = por %p118, %p119
      %s121 = ssub.s32 %s19, %s38
      %s122 = ssub.s32 %s20, %s34
      %s123 = sor.u32 %s121, %s122
      %p124 = scmp.eq.s32.totalorder %s123, 0
      %s126 = sadd.s32 %s125, 1
      %s127 = scalar_select %p124, %s125, %s126
      %p130 = pneg %p124
      %p131 = scmp.eq.s32.totalorder %s12, 1
      %p132 = por %p130, %p131
      %p133 = scmp.ne.s32.totalorder %s125, %s128
      %p134 = scmp.eq.s32.totalorder %s12, 0
      %p135 = por %p133, %p134
      %p136 = scmp.ne.s32.totalorder %s125, %s128
      %p137 = scmp.eq.s32.totalorder %s17, 1
      %p138 = por %p136, %p137
      %p139 = scmp.ne.s32.totalorder %s128, %s129
      %p140 = scmp.eq.s32.totalorder %s17, 0
      %p141 = por %p139, %p140
      %p142 = scmp.ne.s32.totalorder %s128, %s129
      %p143 = scmp.eq.s32.totalorder %s18, 1
      %p144 = por %p142, %p143
      %p146 = scmp.ne.s32.totalorder %s129, %s145
      %p147 = scmp.eq.s32.totalorder %s18, 0
      %p148 = por %p146, %p147
      %p149 = scmp.le.s32.totalorder 1, %s12
      %p150 = scmp.lt.s32.totalorder %s12, 3
      %p151 = pnand %p149, %p150
      %p152 = pneg %p151
      // Predicated region
      $region9: #{tpu_custom_call.1} parent=5 // pred_check
        _
      $region10: #{tpu_custom_call.1} parent=5 // pred_check_branch
        %154 = sbr.rel (%p151) target = $region12
      $region11: #{tpu_custom_call.1} parent=5 // pred_region
        %s155 = ssub.s32 %s12, 1
        // Predicated region
        $region13: #{tpu_custom_call.1} parent=11 // pred_check
          %p156 = pneg %p57
        $region14: #{tpu_custom_call.1} parent=11 // pred_check_branch
          %158 = sbr.rel (%p156) target = $region16
        $region15: #{tpu_custom_call.1} parent=11 // pred_region
          %s159 = smul.u32 2, %s23
          %p160 = scmp.lt.s32.totalorder %s159, 1
          %s161 = scalar_select %p160, %s159, 1
          %s162 = smul.addr %s161, 2
          %s163 = scalar_lea.vmem %s0, %s162
          %s164 = smul.u32 2, %s23
        $region16: #{tpu_custom_call.1} parent=11 // pred_fallthru
          _
      $region12: #{tpu_custom_call.1} parent=5 // pred_fallthru
        _
      %p165 = scmp.lt.s32.totalorder %s12, 2
      // Predicated region
      $region17: #{tpu_custom_call.1} parent=5 // pred_check
        %p166 = pneg %p165
      $region18: #{tpu_custom_call.1} parent=5 // pred_check_branch
        %168 = sbr.rel (%p166) target = $region20
      $region19: #{tpu_custom_call.1} parent=5 // pred_region
        // Predicated region
        $region21: #{tpu_custom_call.1} parent=19 // pred_check
          %p169 = pneg %p79
        $region22: #{tpu_custom_call.1} parent=19 // pred_check_branch
          %171 = sbr.rel (%p169) target = $region24
        $region23: #{tpu_custom_call.1} parent=19 // pred_region
          %s172 = smul.u32 16, %s21
          %p173 = scmp.lt.s32.totalorder %s19, 1
          %s174 = scalar_select %p173, %s19, 1
          %p175 = scmp.lt.s32.totalorder %s172, 15
          %s176 = scalar_select %p175, %s172, 15
          %s177 = smul.addr %s174, 16
          %s178 = sadd.s32 %s176, %s177
          %s179 = smul.addr %s178, 8
          %s180 = scalar_lea.vmem %s1, %s179
          %s181 = smul.u32 16, %s21
        $region24: #{tpu_custom_call.1} parent=19 // pred_fallthru
          _
        // Predicated region
        $region25: #{tpu_custom_call.1} parent=19 // pred_check
          %p182 = pneg %p107
        $region26: #{tpu_custom_call.1} parent=19 // pred_check_branch
          %184 = sbr.rel (%p182) target = $region28
        $region27: #{tpu_custom_call.1} parent=19 // pred_region
          %p185 = scmp.lt.s32.totalorder %s19, 1
          %s186 = scalar_select %p185, %s19, 1
          %p187 = scmp.lt.s32.totalorder %s21, 0
          %s188 = scalar_select %p187, %s21, 0
          %s189 = sadd.s32 %s188, %s186
          %s190 = smul.addr %s189, 4
          %s191 = scalar_lea.vmem %s2, %s190
        $region28: #{tpu_custom_call.1} parent=19 // pred_fallthru
          _
      $region20: #{tpu_custom_call.1} parent=5 // pred_fallthru
        _
      %p192 = scmp.le.s32.totalorder 1, %s12
      %p193 = scmp.lt.s32.totalorder %s12, 3
      %p194 = pnand %p192, %p193
      %p195 = pneg %p194
      // Predicated region
      $region29: #{tpu_custom_call.1} parent=5 // pred_check
        _
      $region30: #{tpu_custom_call.1} parent=5 // pred_check_branch
        %197 = sbr.rel (%p194) target = $region32
      $region31: #{tpu_custom_call.1} parent=5 // pred_region
        %s198 = ssub.s32 %s12, 1
        %s199 = smul.u32 2, %s23
        %p200 = scmp.lt.s32.totalorder %s199, 1
        %s201 = scalar_select %p200, %s199, 1
        %s202 = smul.addr %s201, 2
        %s203 = scalar_lea.vmem %s0, %s202
        %p204 = pneg %p57
        %p205 = pneg %p54
        %s206 = smul.u32 16, %s24
        %p207 = scmp.lt.s32.totalorder %s22, 1
        %s208 = scalar_select %p207, %s22, 1
        %p209 = scmp.lt.s32.totalorder %s206, 15
        %s210 = scalar_select %p209, %s206, 15
        %s211 = smul.addr %s208, 16
        %s212 = sadd.s32 %s210, %s211
        %s213 = smul.addr %s212, 8
        %s214 = scalar_lea.vmem %s1, %s213
        %p215 = pneg %p85
        %p216 = pneg %p82
        %p217 = scmp.lt.s32.totalorder %s22, 1
        %s218 = scalar_select %p217, %s22, 1
        %p219 = scmp.lt.s32.totalorder %s24, 0
        %s220 = scalar_select %p219, %s24, 0
        %s221 = sadd.s32 %s220, %s218
        %s222 = smul.addr %s221, 4
        %s223 = scalar_lea.vmem %s2, %s222
        %p224 = pneg %p113
        %p225 = pneg %p110
        %p226 = pneg %p141
        %p227 = pneg %p138
        %s228 = sand.u32 %s128, 1
        %s229 = scalar_lea.sflag [#allocation4], %s228
        %s230 = sand.u32 %s128, 1
        %s231 = smul.addr %s230, 16
        %s232 = scalar_lea.vmem [#allocation3], %s231
        %s233 = smul.u32 2, %s23
        %p234 = scmp.lt.s32.totalorder %s233, 1
        %s235 = scalar_select %p234, %s233, 1
        %s236 = smul.addr %s235, 2
        %s237 = scalar_lea.vmem %s0, %s236
        %s238 = smul.u32 2, %s23
        %s239 = smul.u32 16, %s24
        %p240 = scmp.lt.s32.totalorder %s22, 1
        %s241 = scalar_select %p240, %s22, 1
        %p242 = scmp.lt.s32.totalorder %s239, 15
        %s243 = scalar_select %p242, %s239, 15
        %s244 = smul.addr %s241, 16
        %s245 = sadd.s32 %s243, %s244
        %s246 = smul.addr %s245, 8
        %s247 = scalar_lea.vmem %s1, %s246
        %s248 = smul.u32 16, %s24
        %p249 = scmp.lt.s32.totalorder %s22, 1
        %s250 = scalar_select %p249, %s22, 1
        %p251 = scmp.lt.s32.totalorder %s24, 0
        %s252 = scalar_select %p251, %s24, 0
        %s253 = sadd.s32 %s252, %s250
        %s254 = smul.addr %s253, 4
        %s255 = scalar_lea.vmem %s2, %s254
        %s256 = smul.u32 2, %s23
        %p258 = scmp.eq.s32.totalorder %s24, 0
        // Predicated region
        $region33: #{tpu_custom_call.1} parent=31 // pred_check
          %p259 = pneg %p258
        $region34: #{tpu_custom_call.1} parent=31 // pred_check_branch
          %261 = sbr.rel (%p259) target = $region36
        $region35: #{tpu_custom_call.1} parent=31 // pred_region
          %262 = vst [vmem:[#allocation2] sm:$0xff] 0.0
          %263 = vst [vmem:[#allocation2 + $0x8] sm:$0xff] 0.0
        $region36: #{tpu_custom_call.1} parent=31 // pred_fallthru
          _
        %v264 = vld [vmem:[%s237] ss:$2 sm:$0x3]
        %s265 = scalar_lea.vmem %s237, 1
        %v266 = vld [vmem:[%s265] ss:$2 sm:$0x3]
        %v267 = vld [vmem:[%s247] sm:$0xff]
        %v268 = vld [vmem:[%s247 + $0x8] sm:$0xff]
        %v269 = vld [vmem:[%s247 + $0x10] sm:$0xff]
        %v270 = vld [vmem:[%s247 + $0x18] sm:$0xff]
        %v271 = vld [vmem:[%s247 + $0x20] sm:$0xff]
        %v272 = vld [vmem:[%s247 + $0x28] sm:$0xff]
        %v273 = vld [vmem:[%s247 + $0x30] sm:$0xff]
        %v274 = vld [vmem:[%s247 + $0x38] sm:$0xff]
        %v275 = vld [vmem:[%s247 + $0x40] sm:$0xff]
        %v276 = vld [vmem:[%s247 + $0x48] sm:$0xff]
        %v277 = vld [vmem:[%s247 + $0x50] sm:$0xff]
        %v278 = vld [vmem:[%s247 + $0x58] sm:$0xff]
        %v279 = vld [vmem:[%s247 + $0x60] sm:$0xff]
        %v280 = vld [vmem:[%s247 + $0x68] sm:$0xff]
        %v281 = vld [vmem:[%s247 + $0x70] sm:$0xff]
        %v282 = vld [vmem:[%s247 + $0x78] sm:$0xff]
        %284 = vset.pattern.permute.xlu0 0
        %285 = vperm.xlu0 %284, %v267
        %v286 = vpop.permute.xlu0 %285
        %289 = vset.pattern.permute.xlu0 0
        %290 = vperm.xlu0 %289, %v268
        %v291 = vpop.permute.xlu0 %290
        %294 = vset.pattern.permute.xlu0 0
        %295 = vperm.xlu0 %294, %v269
        %v296 = vpop.permute.xlu0 %295
        %299 = vset.pattern.permute.xlu0 0
        %300 = vperm.xlu0 %299, %v270
        %v301 = vpop.permute.xlu0 %300
        %304 = vset.pattern.permute.xlu0 0
        %305 = vperm.xlu0 %304, %v271
        %v306 = vpop.permute.xlu0 %305
        %309 = vset.pattern.permute.xlu0 0
        %310 = vperm.xlu0 %309, %v272
        %v311 = vpop.permute.xlu0 %310
        %314 = vset.pattern.permute.xlu0 0
        %315 = vperm.xlu0 %314, %v273
        %v316 = vpop.permute.xlu0 %315
        %319 = vset.pattern.permute.xlu0 0
        %320 = vperm.xlu0 %319, %v274
        %v321 = vpop.permute.xlu0 %320
        %324 = vset.pattern.permute.xlu0 0
        %325 = vperm.xlu0 %324, %v275
        %v326 = vpop.permute.xlu0 %325
        %329 = vset.pattern.permute.xlu0 0
        %330 = vperm.xlu0 %329, %v276
        %v331 = vpop.permute.xlu0 %330
        %334 = vset.pattern.permute.xlu0 0
        %335 = vperm.xlu0 %334, %v277
        %v336 = vpop.permute.xlu0 %335
        %339 = vset.pattern.permute.xlu0 0
        %340 = vperm.xlu0 %339, %v278
        %v341 = vpop.permute.xlu0 %340
        %344 = vset.pattern.permute.xlu0 0
        %345 = vperm.xlu0 %344, %v279
        %v346 = vpop.permute.xlu0 %345
        %349 = vset.pattern.permute.xlu0 0
        %350 = vperm.xlu0 %349, %v280
        %v351 = vpop.permute.xlu0 %350
        %354 = vset.pattern.permute.xlu0 0
        %355 = vperm.xlu0 %354, %v281
        %v356 = vpop.permute.xlu0 %355
        %359 = vset.pattern.permute.xlu0 0
        %360 = vperm.xlu0 %359, %v282
        %v361 = vpop.permute.xlu0 %360
        %v364 = vlaneseq
        %v365 = vshrl.u32 %v364, 7
        %v366 = vsub.s32 0, %v365
        %v367 = vrot.slane %v264, %v366
        %v368 = vlaneseq
        %v369 = vshrl.u32 %v368, 7
        %v370 = vsub.s32 1, %v369
        %v371 = vrot.slane %v264, %v370
        %v374 = vsub.f32 %v286, %v367
        %v375 = vsub.f32 %v286, %v371
        %v376 = vsub.f32 %v291, %v367
        %v377 = vsub.f32 %v291, %v371
        %v378 = vsub.f32 %v296, %v367
        %v379 = vsub.f32 %v296, %v371
        %v380 = vsub.f32 %v301, %v367
        %v381 = vsub.f32 %v301, %v371
        %v382 = vsub.f32 %v306, %v367
        %v383 = vsub.f32 %v306, %v371
        %v384 = vsub.f32 %v311, %v367
        %v385 = vsub.f32 %v311, %v371
        %v386 = vsub.f32 %v316, %v367
        %v387 = vsub.f32 %v316, %v371
        %v388 = vsub.f32 %v321, %v367
        %v389 = vsub.f32 %v321, %v371
        %v390 = vsub.f32 %v326, %v367
        %v391 = vsub.f32 %v326, %v371
        %v392 = vsub.f32 %v331, %v367
        %v393 = vsub.f32 %v331, %v371
        %v394 = vsub.f32 %v336, %v367
        %v395 = vsub.f32 %v336, %v371
        %v396 = vsub.f32 %v341, %v367
        %v397 = vsub.f32 %v341, %v371
        %v398 = vsub.f32 %v346, %v367
        %v399 = vsub.f32 %v346, %v371
        %v400 = vsub.f32 %v351, %v367
        %v401 = vsub.f32 %v351, %v371
        %v402 = vsub.f32 %v356, %v367
        %v403 = vsub.f32 %v356, %v371
        %v404 = vsub.f32 %v361, %v367
        %v405 = vsub.f32 %v361, %v371
        %406 = vset.pattern.permute.xlu0 1
        %407 = vperm.xlu0 %406, %v267
        %v408 = vpop.permute.xlu0 %407
        %410 = vset.pattern.permute.xlu0 1
        %411 = vperm.xlu0 %410, %v268
        %v412 = vpop.permute.xlu0 %411
        %414 = vset.pattern.permute.xlu0 1
        %415 = vperm.xlu0 %414, %v269
        %v416 = vpop.permute.xlu0 %415
        %418 = vset.pattern.permute.xlu0 1
        %419 = vperm.xlu0 %418, %v270
        %v420 = vpop.permute.xlu0 %419
        %422 = vset.pattern.permute.xlu0 1
        %423 = vperm.xlu0 %422, %v271
        %v424 = vpop.permute.xlu0 %423
        %426 = vset.pattern.permute.xlu0 1
        %427 = vperm.xlu0 %426, %v272
        %v428 = vpop.permute.xlu0 %427
        %430 = vset.pattern.permute.xlu0 1
        %431 = vperm.xlu0 %430, %v273
        %v432 = vpop.permute.xlu0 %431
        %434 = vset.pattern.permute.xlu0 1
        %435 = vperm.xlu0 %434, %v274
        %v436 = vpop.permute.xlu0 %435
        %438 = vset.pattern.permute.xlu0 1
        %439 = vperm.xlu0 %438, %v275
        %v440 = vpop.permute.xlu0 %439
        %442 = vset.pattern.permute.xlu0 1
        %443 = vperm.xlu0 %442, %v276
        %v444 = vpop.permute.xlu0 %443
        %446 = vset.pattern.permute.xlu0 1
        %447 = vperm.xlu0 %446, %v277
        %v448 = vpop.permute.xlu0 %447
        %450 = vset.pattern.permute.xlu0 1
        %451 = vperm.xlu0 %450, %v278
        %v452 = vpop.permute.xlu0 %451
        %454 = vset.pattern.permute.xlu0 1
        %455 = vperm.xlu0 %454, %v279
        %v456 = vpop.permute.xlu0 %455
        %458 = vset.pattern.permute.xlu0 1
        %459 = vperm.xlu0 %458, %v280
        %v460 = vpop.permute.xlu0 %459
        %462 = vset.pattern.permute.xlu0 1
        %463 = vperm.xlu0 %462, %v281
        %v464 = vpop.permute.xlu0 %463
        %466 = vset.pattern.permute.xlu0 1
        %467 = vperm.xlu0 %466, %v282
        %v468 = vpop.permute.xlu0 %467
        %v471 = vlaneseq
        %v472 = vshrl.u32 %v471, 7
        %v473 = vsub.s32 0, %v472
        %v474 = vrot.slane %v266, %v473
        %v475 = vlaneseq
        %v476 = vshrl.u32 %v475, 7
        %v477 = vsub.s32 1, %v476
        %v478 = vrot.slane %v266, %v477
        %v481 = vsub.f32 %v408, %v474
        %v482 = vsub.f32 %v408, %v478
        %v483 = vsub.f32 %v412, %v474
        %v484 = vsub.f32 %v412, %v478
        %v485 = vsub.f32 %v416, %v474
        %v486 = vsub.f32 %v416, %v478
        %v487 = vsub.f32 %v420, %v474
        %v488 = vsub.f32 %v420, %v478
        %v489 = vsub.f32 %v424, %v474
        %v490 = vsub.f32 %v424, %v478
        %v491 = vsub.f32 %v428, %v474
        %v492 = vsub.f32 %v428, %v478
        %v493 = vsub.f32 %v432, %v474
        %v494 = vsub.f32 %v432, %v478
        %v495 = vsub.f32 %v436, %v474
        %v496 = vsub.f32 %v436, %v478
        %v497 = vsub.f32 %v440, %v474
        %v498 = vsub.f32 %v440, %v478
        %v499 = vsub.f32 %v444, %v474
        %v500 = vsub.f32 %v444, %v478
        %v501 = vsub.f32 %v448, %v474
        %v502 = vsub.f32 %v448, %v478
        %v503 = vsub.f32 %v452, %v474
        %v504 = vsub.f32 %v452, %v478
        %v505 = vsub.f32 %v456, %v474
        %v506 = vsub.f32 %v456, %v478
        %v507 = vsub.f32 %v460, %v474
        %v508 = vsub.f32 %v460, %v478
        %v509 = vsub.f32 %v464, %v474
        %v510 = vsub.f32 %v464, %v478
        %v511 = vsub.f32 %v468, %v474
        %v512 = vsub.f32 %v468, %v478
        %v513 = vmul.f32 %v374, %v374
        %v514 = vmul.f32 %v375, %v375
        %v515 = vmul.f32 %v376, %v376
        %v516 = vmul.f32 %v377, %v377
        %v517 = vmul.f32 %v378, %v378
        %v518 = vmul.f32 %v379, %v379
        %v519 = vmul.f32 %v380, %v380
        %v520 = vmul.f32 %v381, %v381
        %v521 = vmul.f32 %v382, %v382
        %v522 = vmul.f32 %v383, %v383
        %v523 = vmul.f32 %v384, %v384
        %v524 = vmul.f32 %v385, %v385
        %v525 = vmul.f32 %v386, %v386
        %v526 = vmul.f32 %v387, %v387
        %v527 = vmul.f32 %v388, %v388
        %v528 = vmul.f32 %v389, %v389
        %v529 = vmul.f32 %v390, %v390
        %v530 = vmul.f32 %v391, %v391
        %v531 = vmul.f32 %v392, %v392
        %v532 = vmul.f32 %v393, %v393
        %v533 = vmul.f32 %v394, %v394
        %v534 = vmul.f32 %v395, %v395
        %v535 = vmul.f32 %v396, %v396
        %v536 = vmul.f32 %v397, %v397
        %v537 = vmul.f32 %v398, %v398
        %v538 = vmul.f32 %v399, %v399
        %v539 = vmul.f32 %v400, %v400
        %v540 = vmul.f32 %v401, %v401
        %v541 = vmul.f32 %v402, %v402
        %v542 = vmul.f32 %v403, %v403
        %v543 = vmul.f32 %v404, %v404
        %v544 = vmul.f32 %v405, %v405
        %v545 = vmul.f32 %v481, %v481
        %v546 = vmul.f32 %v482, %v482
        %v547 = vmul.f32 %v483, %v483
        %v548 = vmul.f32 %v484, %v484
        %v549 = vmul.f32 %v485, %v485
        %v550 = vmul.f32 %v486, %v486
        %v551 = vmul.f32 %v487, %v487
        %v552 = vmul.f32 %v488, %v488
        %v553 = vmul.f32 %v489, %v489
        %v554 = vmul.f32 %v490, %v490
        %v555 = vmul.f32 %v491, %v491
        %v556 = vmul.f32 %v492, %v492
        %v557 = vmul.f32 %v493, %v493
        %v558 = vmul.f32 %v494, %v494
        %v559 = vmul.f32 %v495, %v495
        %v560 = vmul.f32 %v496, %v496
        %v561 = vmul.f32 %v497, %v497
        %v562 = vmul.f32 %v498, %v498
        %v563 = vmul.f32 %v499, %v499
        %v564 = vmul.f32 %v500, %v500
        %v565 = vmul.f32 %v501, %v501
        %v566 = vmul.f32 %v502, %v502
        %v567 = vmul.f32 %v503, %v503
        %v568 = vmul.f32 %v504, %v504
        %v569 = vmul.f32 %v505, %v505
        %v570 = vmul.f32 %v506, %v506
        %v571 = vmul.f32 %v507, %v507
        %v572 = vmul.f32 %v508, %v508
        %v573 = vmul.f32 %v509, %v509
        %v574 = vmul.f32 %v510, %v510
        %v575 = vmul.f32 %v511, %v511
        %v576 = vmul.f32 %v512, %v512
        %v577 = vadd.f32 %v513, %v545
        %v578 = vadd.f32 %v514, %v546
        %v579 = vadd.f32 %v515, %v547
        %v580 = vadd.f32 %v516, %v548
        %v581 = vadd.f32 %v517, %v549
        %v582 = vadd.f32 %v518, %v550
        %v583 = vadd.f32 %v519, %v551
        %v584 = vadd.f32 %v520, %v552
        %v585 = vadd.f32 %v521, %v553
        %v586 = vadd.f32 %v522, %v554
        %v587 = vadd.f32 %v523, %v555
        %v588 = vadd.f32 %v524, %v556
        %v589 = vadd.f32 %v525, %v557
        %v590 = vadd.f32 %v526, %v558
        %v591 = vadd.f32 %v527, %v559
        %v592 = vadd.f32 %v528, %v560
        %v593 = vadd.f32 %v529, %v561
        %v594 = vadd.f32 %v530, %v562
        %v595 = vadd.f32 %v531, %v563
        %v596 = vadd.f32 %v532, %v564
        %v597 = vadd.f32 %v533, %v565
        %v598 = vadd.f32 %v534, %v566
        %v599 = vadd.f32 %v535, %v567
        %v600 = vadd.f32 %v536, %v568
        %v601 = vadd.f32 %v537, %v569
        %v602 = vadd.f32 %v538, %v570
        %v603 = vadd.f32 %v539, %v571
        %v604 = vadd.f32 %v540, %v572
        %v605 = vadd.f32 %v541, %v573
        %v606 = vadd.f32 %v542, %v574
        %v607 = vadd.f32 %v543, %v575
        %v608 = vadd.f32 %v544, %v576
        %v609 = vsub.f32 0.0, %v577
        %v610 = vsub.f32 0.0, %v578
        %v611 = vsub.f32 0.0, %v579
        %v612 = vsub.f32 0.0, %v580
        %v613 = vsub.f32 0.0, %v581
        %v614 = vsub.f32 0.0, %v582
        %v615 = vsub.f32 0.0, %v583
        %v616 = vsub.f32 0.0, %v584
        %v617 = vsub.f32 0.0, %v585
        %v618 = vsub.f32 0.0, %v586
        %v619 = vsub.f32 0.0, %v587
        %v620 = vsub.f32 0.0, %v588
        %v621 = vsub.f32 0.0, %v589
        %v622 = vsub.f32 0.0, %v590
        %v623 = vsub.f32 0.0, %v591
        %v624 = vsub.f32 0.0, %v592
        %v625 = vsub.f32 0.0, %v593
        %v626 = vsub.f32 0.0, %v594
        %v627 = vsub.f32 0.0, %v595
        %v628 = vsub.f32 0.0, %v596
        %v629 = vsub.f32 0.0, %v597
        %v630 = vsub.f32 0.0, %v598
        %v631 = vsub.f32 0.0, %v599
        %v632 = vsub.f32 0.0, %v600
        %v633 = vsub.f32 0.0, %v601
        %v634 = vsub.f32 0.0, %v602
        %v635 = vsub.f32 0.0, %v603
        %v636 = vsub.f32 0.0, %v604
        %v637 = vsub.f32 0.0, %v605
        %v638 = vsub.f32 0.0, %v606
        %v639 = vsub.f32 0.0, %v607
        %v640 = vsub.f32 0.0, %v608
        %v641 = vmul.f32 %v609, 1.442695
        %v642 = vpow.pop %v641
        %v643 = vmul.f32 %v610, 1.442695
        %v644 = vpow.pop %v643
        %v645 = vmul.f32 %v611, 1.442695
        %v646 = vpow.pop %v645
        %v647 = vmul.f32 %v612, 1.442695
        %v648 = vpow.pop %v647
        %v649 = vmul.f32 %v613, 1.442695
        %v650 = vpow.pop %v649
        %v651 = vmul.f32 %v614, 1.442695
        %v652 = vpow.pop %v651
        %v653 = vmul.f32 %v615, 1.442695
        %v654 = vpow.pop %v653
        %v655 = vmul.f32 %v616, 1.442695
        %v656 = vpow.pop %v655
        %v657 = vmul.f32 %v617, 1.442695
        %v658 = vpow.pop %v657
        %v659 = vmul.f32 %v618, 1.442695
        %v660 = vpow.pop %v659
        %v661 = vmul.f32 %v619, 1.442695
        %v662 = vpow.pop %v661
        %v663 = vmul.f32 %v620, 1.442695
        %v664 = vpow.pop %v663
        %v665 = vmul.f32 %v621, 1.442695
        %v666 = vpow.pop %v665
        %v667 = vmul.f32 %v622, 1.442695
        %v668 = vpow.pop %v667
        %v669 = vmul.f32 %v623, 1.442695
        %v670 = vpow.pop %v669
        %v671 = vmul.f32 %v624, 1.442695
        %v672 = vpow.pop %v671
        %v673 = vmul.f32 %v625, 1.442695
        %v674 = vpow.pop %v673
        %v675 = vmul.f32 %v626, 1.442695
        %v676 = vpow.pop %v675
        %v677 = vmul.f32 %v627, 1.442695
        %v678 = vpow.pop %v677
        %v679 = vmul.f32 %v628, 1.442695
        %v680 = vpow.pop %v679
        %v681 = vmul.f32 %v629, 1.442695
        %v682 = vpow.pop %v681
        %v683 = vmul.f32 %v630, 1.442695
        %v684 = vpow.pop %v683
        %v685 = vmul.f32 %v631, 1.442695
        %v686 = vpow.pop %v685
        %v687 = vmul.f32 %v632, 1.442695
        %v688 = vpow.pop %v687
        %v689 = vmul.f32 %v633, 1.442695
        %v690 = vpow.pop %v689
        %v691 = vmul.f32 %v634, 1.442695
        %v692 = vpow.pop %v691
        %v693 = vmul.f32 %v635, 1.442695
        %v694 = vpow.pop %v693
        %v695 = vmul.f32 %v636, 1.442695
        %v696 = vpow.pop %v695
        %v697 = vmul.f32 %v637, 1.442695
        %v698 = vpow.pop %v697
        %v699 = vmul.f32 %v638, 1.442695
        %v700 = vpow.pop %v699
        %v701 = vmul.f32 %v639, 1.442695
        %v702 = vpow.pop %v701
        %v703 = vmul.f32 %v640, 1.442695
        %v704 = vpow.pop %v703
        %v705 = vpack.c.bf16 %v646, %v642
        %v706 = vpack.c.bf16 %v648, %v644
        %v707 = vpack.c.bf16 %v654, %v650
        %v708 = vpack.c.bf16 %v656, %v652
        %v709 = vpack.c.bf16 %v662, %v658
        %v710 = vpack.c.bf16 %v664, %v660
        %v711 = vpack.c.bf16 %v670, %v666
        %v712 = vpack.c.bf16 %v672, %v668
        %v713 = vpack.c.bf16 %v678, %v674
        %v714 = vpack.c.bf16 %v680, %v676
        %v715 = vpack.c.bf16 %v686, %v682
        %v716 = vpack.c.bf16 %v688, %v684
        %v717 = vpack.c.bf16 %v694, %v690
        %v718 = vpack.c.bf16 %v696, %v692
        %v719 = vpack.c.bf16 %v702, %v698
        %v720 = vpack.c.bf16 %v704, %v700
        %v721 = vld [vmem:[%s255] sm:$0xf]
        %v722 = vld [vmem:[#allocation2] sm:$0xff]
        %v723 = vld [vmem:[#allocation2 + $0x8] sm:$0xff]
        %724 = vmatprep.subr.bf16.mxu0 %v706
        %725 = vmatpush1.bf16.msra.mxu0 %v705
        %726 = vmatprep.subr.bf16.mxu0 %v708
        %727 = vmatpush1.bf16.msra.mxu0 %v707
        %728 = vmatprep.subr.bf16.mxu0 %v710
        %729 = vmatpush1.bf16.msra.mxu0 %v709
        %730 = vmatprep.subr.bf16.mxu0 %v712
        %731 = vmatpush1.bf16.msra.mxu0 %v711
        %732 = vmatprep.subr.bf16.mxu0 %v714
        %733 = vmatpush1.bf16.msra.mxu0 %v713
        %734 = vmatprep.subr.bf16.mxu0 %v716
        %735 = vmatpush1.bf16.msra.mxu0 %v715
        %736 = vmatprep.subr.bf16.mxu0 %v718
        %737 = vmatpush1.bf16.msra.mxu0 %v717
        %738 = vmatprep.subr.bf16.mxu0 %v720
        %739 = vmatpush1.bf16.msra.mxu0 %v719
        %740 = vmatprep.subr.bf16.mxu0 0
        %741 = vmatpush1.bf16.msra.mxu0 0
        %742 = vmatprep.subr.bf16.mxu0 0
        %743 = vmatpush1.bf16.msra.mxu0 0
        %744 = vmatprep.subr.bf16.mxu0 0
        %745 = vmatpush1.bf16.msra.mxu0 0
        %746 = vmatprep.subr.bf16.mxu0 0
        %747 = vmatpush1.bf16.msra.mxu0 0
        %748 = vmatprep.subr.bf16.mxu0 0
        %749 = vmatpush1.bf16.msra.mxu0 0
        %750 = vmatprep.subr.bf16.mxu0 0
        %751 = vmatpush1.bf16.msra.mxu0 0
        %752 = vmatprep.subr.bf16.mxu0 0
        %753 = vmatpush1.bf16.msra.mxu0 0
        %754 = vmatprep.subr.bf16.mxu0 0
        %755 = vmatpush1.bf16.msra.mxu0 0
        %756 = vmatprep.mubr.bf16.mxu0 0
        %757 = vmatmul.mubr.bf16.gmra.mrb[0].mxu0 %v721
        %v758 = vpop.f32.mrb[0].mxu0
        %v759 = vadd.f32 0.0, %v758
        %v760 = vpop.f32.mrb[0].mxu0
        %v761 = vadd.f32 0.0, %v760
        %v762 = vpop.f32.mrb[0].mxu0
        %v763 = vpop.f32.mrb[0].mxu0
        %764 = vdwg.mxu0
        %v765 = vadd.f32 %v722, %v759
        %v766 = vadd.f32 %v723, %v761
        %767 = vst [vmem:[#allocation2] sm:$0xff] %v765
        %768 = vst [vmem:[#allocation2 + $0x8] sm:$0xff] %v766
        // Predicated region
        $region37: #{tpu_custom_call.1} parent=31 // pred_check
          %p769 = pneg %p258
        $region38: #{tpu_custom_call.1} parent=31 // pred_check_branch
          %771 = sbr.rel (%p769) target = $region40
        $region39: #{tpu_custom_call.1} parent=31 // pred_region
          %v772 = vld [vmem:[#allocation2] sm:$0xff]
          %v773 = vld [vmem:[#allocation2 + $0x8] sm:$0xff]
          %v774 = vadd.f32 %v772, 1e-08
          %v775 = vadd.f32 %v773, 1e-08
          %v776 = vrcp.pop %v774
          %v777 = vrcp.pop %v775
          %v778 = vsub.f32 0.0, %v772
          %v779 = vsub.f32 0.0, %v773
          %v780 = vmul.f32 %v778, 1.442695
          %v781 = vpow.pop %v780
          %v782 = vmul.f32 %v779, 1.442695
          %v783 = vpow.pop %v782
          %v784 = vsub.f32 1.0, %v781
          %v785 = vsub.f32 1.0, %v783
          %v786 = vlaneseq
          %v787 = vshrl.u32 %v786, 7
          %v788 = vsub.s32 4, %v787
          %v789 = vrot.slane %v776, %v788
          %v790 = vlaneseq
          %v791 = vshrl.u32 %v790, 7
          %v792 = vsub.s32 4, %v791
          %v793 = vrot.slane %v777, %v792
          %v794 = vmul.f32 %v772, %v789
          %v795 = vmul.f32 %v773, %v793
          %v796 = vlaneseq
          %v797 = vshrl.u32 %v796, 7
          %vm798 = vcmp.eq.s32.totalorder %v797, 4
          %v799 = vlaneseq
          %v800 = vshrl.u32 %v799, 7
          %v801 = vsub.s32 4, %v800
          %v802 = vrot.slane %v784, %v801
          %v803 = vlaneseq
          %v804 = vshrl.u32 %v803, 7
          %v805 = vsub.s32 4, %v804
          %v806 = vrot.slane %v785, %v805
          %v807 = vsel %vm798, %v802, %v794
          %v808 = vsel %vm798, %v806, %v795
          %809 = vst [vmem:[%s232] sm:$0xff] %v807
          %810 = vst [vmem:[%s232 + $0x8] sm:$0xff] %v808
        $region40: #{tpu_custom_call.1} parent=31 // pred_fallthru
          _
        %s811 = sand.u32 %s128, 1
        %s812 = scalar_lea.sflag [#allocation4], %s811
        %s813 = sand.u32 %s128, 1
        %s814 = smul.addr %s813, 16
        %s815 = scalar_lea.vmem [#allocation3], %s814
        // Predicated region
        $region41: #{tpu_custom_call.1} parent=31 // pred_check
          %p816 = pneg %p138
        $region42: #{tpu_custom_call.1} parent=31 // pred_check_branch
          %818 = sbr.rel (%p816) target = $region44
        $region43: #{tpu_custom_call.1} parent=31 // pred_region
          %s819 = smul.u32 2, %s23
          %s821 = ssub.s32 256, 256
          %822 = vsyncadd %s812, %s821
          %s823 = smul.addr %s22, 2
          %s824 = sadd.s32 %s819, %s823
          %s825 = smul.addr %s824, 128
          %s826 = scalar_lea.hbm %s3, %s825
          %s828 = sshll.u32 %s815, 4
          %s829 = int_to_ptr.vmem [resolvable:$true] %s828
          %831 = dma.vmem_to_hbm [thread:$0]  %s829, 256, %s826, %s812
        $region44: #{tpu_custom_call.1} parent=31 // pred_fallthru
          _
      $region32: #{tpu_custom_call.1} parent=5 // pred_fallthru
        _
      %p832 = scmp.le.s32.totalorder 2, %s12
      // Predicated region
      $region45: #{tpu_custom_call.1} parent=5 // pred_check
        %p833 = pneg %p832
      $region46: #{tpu_custom_call.1} parent=5 // pred_check_branch
        %835 = sbr.rel (%p833) target = $region48
      $region47: #{tpu_custom_call.1} parent=5 // pred_region
        %s836 = ssub.s32 %s12, 2
        // Predicated region
        $region49: #{tpu_custom_call.1} parent=47 // pred_check
          %p837 = pneg %p144
        $region50: #{tpu_custom_call.1} parent=47 // pred_check_branch
          %839 = sbr.rel (%p837) target = $region52
        $region51: #{tpu_custom_call.1} parent=47 // pred_region
          %s840 = sand.u32 %s129, 1
          %s841 = scalar_lea.sflag [#allocation4], %s840
          %s842 = sand.u32 %s129, 1
          %s843 = smul.addr %s842, 16
          %s844 = scalar_lea.vmem [#allocation3], %s843
          %845 = dma.done %s841, 256
        $region52: #{tpu_custom_call.1} parent=47 // pred_fallthru
          _
      $region48: #{tpu_custom_call.1} parent=5 // pred_fallthru
        _
    $region6: #{tpu_custom_call.1} parent=1 // loop_footer
      %s16 = sadd.s32 1, %s12
    $region7: #{tpu_custom_call.1} parent=1 // loop_footer_branch
      %11 = sbr.rel target = $region3
    $region8: #{tpu_custom_call.1} parent=1 // loop_exit
      _
    %846 = vsyncpa [#allocation4], 1
    %s847 = scalar_lea.sflag [#allocation4], 1
    %848 = vsyncpa %s847, 1

</llo_original>
